<compile_context>
chip_gen: v5e
topology: v5e:2x2
jax: 0.10.0
libtpu: 0.0.40
codegen_flags: <defaults>
</compile_context>

<pallas_src>
import jax
import jax.numpy as jnp
from jax.experimental import pallas as pl
from jax.experimental.pallas import tpu as pltpu


def _gcl_kernel(adj_ref, x_ref, w_ref, bias_ref, out_ref):
    # adj_ref : (n_blocks, tm, N)          bf16  -- row tile of every adj block
    # x_ref   : (N, out_d)                 bf16  -- whole node-feature matrix
    # w_ref   : (n_blocks, out_d, in_d)    bf16  -- whole weight stack
    # bias_ref: (1, in_d)                  f32
    # out_ref : (tm, in_d)                 f32
    x = x_ref[...]
    n_blocks = adj_ref.shape[0]

    # Start the accumulator at the (broadcast) bias; stays f32 throughout.
    acc = jnp.broadcast_to(bias_ref[...], out_ref.shape).astype(jnp.float32)

    # Statically unrolled block loop.  Reordered contraction:
    #   adj_b @ (x @ W_b) == (adj_b @ x) @ W_b
    # so the big O(N^2) matmul runs at width out_d, and the 4-way sum is a
    # plain accumulating dot chain (MRB in-place accumulate on v7x; cheap
    # VPU adds elsewhere).
    for b in range(n_blocks):
        y_b = jnp.dot(adj_ref[b], x, preferred_element_type=jnp.float32)
        acc = acc + jnp.dot(y_b.astype(x.dtype), w_ref[b],
                            preferred_element_type=jnp.float32)

    out_ref[...] = acc


_ROW_TILE = 512  # row-tile target for large N (>=512 rows ~ HBM roofline)


@jax.jit
def gcl_forward(x, adj, weights, bias):
    """out = sum_b adj[b] @ (x @ weights[b]) + bias.

    x: (N, output_dim), adj: (n_blocks, N, N),
    weights: (n_blocks, output_dim, input_dim), bias: (input_dim,)
    -> (N, input_dim) float32.
    """
    n_blocks, out_d, in_d = weights.shape
    n = x.shape[0]

    # bf16 for the MXU operands (adj is the dominant HBM stream; in a real
    # pipeline adj/x would already be stored bf16 so this cast is free).
    adj_bf = adj.astype(jnp.bfloat16)
    x_bf = x.astype(jnp.bfloat16)
    w_bf = weights.astype(jnp.bfloat16)
    bias2d = bias.astype(jnp.float32).reshape(1, in_d)

    # Row tiling: independent row tiles of adj/out -> pipelined DMA and a
    # "parallel" grid axis (v7x megacore).  Degenerates to one step at N=16.
    tm = _ROW_TILE if (n > _ROW_TILE and n % _ROW_TILE == 0) else n
    grid = (n // tm,)

    return pl.pallas_call(
        _gcl_kernel,
        out_shape=jax.ShapeDtypeStruct((n, in_d), jnp.float32),
        grid=grid,
        in_specs=[
            pl.BlockSpec((n_blocks, tm, n), lambda i: (0, i, 0)),        # adj row tile
            pl.BlockSpec((n, out_d), lambda i: (0, 0)),                  # x (resident)
            pl.BlockSpec((n_blocks, out_d, in_d), lambda i: (0, 0, 0)),  # weights (resident)
            pl.BlockSpec((1, in_d), lambda i: (0, 0)),                   # bias
        ],
        out_specs=pl.BlockSpec((tm, in_d), lambda i: (i, 0)),
        compiler_params=pltpu.CompilerParams(
            dimension_semantics=("parallel",),
        ),
    )(adj_bf, x_bf, w_bf, bias2d)


if __name__ == "__main__":
    # Module hyper-params (kept small): Gcl(input_size=32, output_size=8)
    input_dim = 32   # feature dim of the OUTPUT / bias
    output_dim = 8   # feature dim of the INPUT x / weight rows
    n_nodes = 16
    n_blocks = 4

    key = jax.random.PRNGKey(0)
    kx, kadj, kw, kb = jax.random.split(key, 4)

    weights = jax.random.uniform(kw, (n_blocks, output_dim, input_dim),
                                 jnp.float32, minval=-1.0, maxval=1.0)
    bias = jax.random.uniform(kb, (input_dim,), jnp.float32,
                              minval=-1.0, maxval=1.0)
    x = jax.random.uniform(kx, (n_nodes, output_dim), jnp.float32,
                           minval=-1.0, maxval=1.0)
    adj_dense = jax.random.uniform(kadj, (n_blocks, n_nodes, n_nodes),
                                   jnp.float32)
    adj = jnp.where(adj_dense > 0.7, adj_dense, 0.0)   # ~70% zeros (sparse-ish)

    out = jax.block_until_ready(gcl_forward(x, adj, weights, bias))
    assert out.shape == (n_nodes, input_dim)

    HI = jax.lax.Precision.HIGHEST

    # Reference 1 (tight): the same math as the kernel (bf16 operands, f32
    # accumulation, bf16 stage-2 operand) written with independent jnp
    # einsums — validates the Pallas plumbing/indexing.
    adj_r = adj.astype(jnp.bfloat16).astype(jnp.float32)
    x_r = x.astype(jnp.bfloat16).astype(jnp.float32)
    w_r = weights.astype(jnp.bfloat16).astype(jnp.float32)
    y_r = jnp.einsum("bnm,mf->bnf", adj_r, x_r, precision=HI)
    y_r = y_r.astype(jnp.bfloat16).astype(jnp.float32)
    ref_bf16 = jnp.einsum("bnf,bfd->nd", y_r, w_r, precision=HI) + bias
    max_err = float(jnp.max(jnp.abs(out - ref_bf16)))
    assert jnp.allclose(out, ref_bf16, atol=1e-1, rtol=5e-2), \
        f"mismatch vs bf16-math reference (max abs err {max_err})"

    # Reference 2 (loose, norm-based): full-f32 math of the original module.
    # bf16 inputs shift the result at the ~1% level by design.
    ref_f32 = jnp.einsum("bnm,md,bdf->nf", adj, x, weights, precision=HI) + bias
    rel = float(jnp.linalg.norm(out - ref_f32) / jnp.linalg.norm(ref_f32))
    assert rel < 5e-2, f"relative error vs f32 reference too large: {rel}"

    print("KERNEL_OK")
</pallas_src>

<mosaic_0001>
module attributes {stable_mosaic.version = 11 : i64} {
  func.func @_gcl_kernel(%arg0: i32, %arg1: memref<4x16x16xbf16, #tpu.memory_space<vmem>>, %arg2: memref<16x8xbf16, #tpu.memory_space<vmem>>, %arg3: memref<4x8x32xbf16, #tpu.memory_space<vmem>>, %arg4: memref<1x32xf32, #tpu.memory_space<vmem>>, %arg5: memref<16x32xf32, #tpu.memory_space<vmem>>) attributes {dimension_semantics = [#tpu.dimension_semantics<parallel>], iteration_bounds = array<i64: 1>, scalar_prefetch = 0 : i64, scratch_operands = 0 : i64, tpu.core_type = #tpu.core_type<tc>, window_params = [{transform_indices = @transform_0, window_bounds = array<i64: 4, 16, 16>}, {pipeline_mode = #tpu.pipeline_mode<synchronous>, transform_indices = @transform_1, window_bounds = array<i64: 16, 8>}, {pipeline_mode = #tpu.pipeline_mode<synchronous>, transform_indices = @transform_2, window_bounds = array<i64: 4, 8, 32>}, {pipeline_mode = #tpu.pipeline_mode<synchronous>, transform_indices = @transform_3, window_bounds = array<i64: 1, 32>}, {transform_indices = @transform_4, window_bounds = array<i64: 16, 32>}]} {
    %c0 = arith.constant 0 : index
    %c0_0 = arith.constant 0 : index
    %0 = vector.load %arg2[%c0, %c0_0] : memref<16x8xbf16, #tpu.memory_space<vmem>>, vector<16x8xbf16>
    %c0_1 = arith.constant 0 : index
    %c0_2 = arith.constant 0 : index
    %1 = vector.load %arg4[%c0_1, %c0_2] : memref<1x32xf32, #tpu.memory_space<vmem>>, vector<1x32xf32>
    %2 = vector.shape_cast %1 : vector<1x32xf32> to vector<1x32xf32>
    %3 = vector.broadcast %2 : vector<1x32xf32> to vector<16x32xf32>
    %c0_3 = arith.constant 0 : index
    %c0_4 = arith.constant 0 : index
    %c0_5 = arith.constant 0 : index
    %4 = vector.load %arg1[%c0_3, %c0_4, %c0_5] : memref<4x16x16xbf16, #tpu.memory_space<vmem>>, vector<1x16x16xbf16>
    %5 = vector.shape_cast %4 : vector<1x16x16xbf16> to vector<16x16xbf16>
    %cst = arith.constant dense<0.000000e+00> : vector<16x8xf32>
    %6 = tpu.matmul %5, %0, %cst {dimension_numbers = #tpu.dot_dimension_numbers<[1], [0], [0], [1], [0, 0, 1, 1], [], []>} : vector<16x16xbf16>, vector<16x8xbf16>, vector<16x8xf32> -> vector<16x8xf32>
    %7 = arith.truncf %6 : vector<16x8xf32> to vector<16x8xbf16>
    %c0_6 = arith.constant 0 : index
    %c0_7 = arith.constant 0 : index
    %c0_8 = arith.constant 0 : index
    %8 = vector.load %arg3[%c0_6, %c0_7, %c0_8] : memref<4x8x32xbf16, #tpu.memory_space<vmem>>, vector<1x8x32xbf16>
    %9 = vector.shape_cast %8 : vector<1x8x32xbf16> to vector<8x32xbf16>
    %cst_9 = arith.constant dense<0.000000e+00> : vector<16x32xf32>
    %10 = tpu.matmul %7, %9, %cst_9 {dimension_numbers = #tpu.dot_dimension_numbers<[1], [0], [0], [1], [0, 0, 1, 1], [], []>} : vector<16x8xbf16>, vector<8x32xbf16>, vector<16x32xf32> -> vector<16x32xf32>
    %11 = arith.addf %3, %10 : vector<16x32xf32>
    %c1 = arith.constant 1 : index
    %c0_10 = arith.constant 0 : index
    %c0_11 = arith.constant 0 : index
    %12 = vector.load %arg1[%c1, %c0_10, %c0_11] : memref<4x16x16xbf16, #tpu.memory_space<vmem>>, vector<1x16x16xbf16>
    %13 = vector.shape_cast %12 : vector<1x16x16xbf16> to vector<16x16xbf16>
    %cst_12 = arith.constant dense<0.000000e+00> : vector<16x8xf32>
    %14 = tpu.matmul %13, %0, %cst_12 {dimension_numbers = #tpu.dot_dimension_numbers<[1], [0], [0], [1], [0, 0, 1, 1], [], []>} : vector<16x16xbf16>, vector<16x8xbf16>, vector<16x8xf32> -> vector<16x8xf32>
    %15 = arith.truncf %14 : vector<16x8xf32> to vector<16x8xbf16>
    %c1_13 = arith.constant 1 : index
    %c0_14 = arith.constant 0 : index
    %c0_15 = arith.constant 0 : index
    %16 = vector.load %arg3[%c1_13, %c0_14, %c0_15] : memref<4x8x32xbf16, #tpu.memory_space<vmem>>, vector<1x8x32xbf16>
    %17 = vector.shape_cast %16 : vector<1x8x32xbf16> to vector<8x32xbf16>
    %cst_16 = arith.constant dense<0.000000e+00> : vector<16x32xf32>
    %18 = tpu.matmul %15, %17, %cst_16 {dimension_numbers = #tpu.dot_dimension_numbers<[1], [0], [0], [1], [0, 0, 1, 1], [], []>} : vector<16x8xbf16>, vector<8x32xbf16>, vector<16x32xf32> -> vector<16x32xf32>
    %19 = arith.addf %11, %18 : vector<16x32xf32>
    %c2 = arith.constant 2 : index
    %c0_17 = arith.constant 0 : index
    %c0_18 = arith.constant 0 : index
    %20 = vector.load %arg1[%c2, %c0_17, %c0_18] : memref<4x16x16xbf16, #tpu.memory_space<vmem>>, vector<1x16x16xbf16>
    %21 = vector.shape_cast %20 : vector<1x16x16xbf16> to vector<16x16xbf16>
    %cst_19 = arith.constant dense<0.000000e+00> : vector<16x8xf32>
    %22 = tpu.matmul %21, %0, %cst_19 {dimension_numbers = #tpu.dot_dimension_numbers<[1], [0], [0], [1], [0, 0, 1, 1], [], []>} : vector<16x16xbf16>, vector<16x8xbf16>, vector<16x8xf32> -> vector<16x8xf32>
    %23 = arith.truncf %22 : vector<16x8xf32> to vector<16x8xbf16>
    %c2_20 = arith.constant 2 : index
    %c0_21 = arith.constant 0 : index
    %c0_22 = arith.constant 0 : index
    %24 = vector.load %arg3[%c2_20, %c0_21, %c0_22] : memref<4x8x32xbf16, #tpu.memory_space<vmem>>, vector<1x8x32xbf16>
    %25 = vector.shape_cast %24 : vector<1x8x32xbf16> to vector<8x32xbf16>
    %cst_23 = arith.constant dense<0.000000e+00> : vector<16x32xf32>
    %26 = tpu.matmul %23, %25, %cst_23 {dimension_numbers = #tpu.dot_dimension_numbers<[1], [0], [0], [1], [0, 0, 1, 1], [], []>} : vector<16x8xbf16>, vector<8x32xbf16>, vector<16x32xf32> -> vector<16x32xf32>
    %27 = arith.addf %19, %26 : vector<16x32xf32>
    %c3 = arith.constant 3 : index
    %c0_24 = arith.constant 0 : index
    %c0_25 = arith.constant 0 : index
    %28 = vector.load %arg1[%c3, %c0_24, %c0_25] : memref<4x16x16xbf16, #tpu.memory_space<vmem>>, vector<1x16x16xbf16>
    %29 = vector.shape_cast %28 : vector<1x16x16xbf16> to vector<16x16xbf16>
    %cst_26 = arith.constant dense<0.000000e+00> : vector<16x8xf32>
    %30 = tpu.matmul %29, %0, %cst_26 {dimension_numbers = #tpu.dot_dimension_numbers<[1], [0], [0], [1], [0, 0, 1, 1], [], []>} : vector<16x16xbf16>, vector<16x8xbf16>, vector<16x8xf32> -> vector<16x8xf32>
    %31 = arith.truncf %30 : vector<16x8xf32> to vector<16x8xbf16>
    %c3_27 = arith.constant 3 : index
    %c0_28 = arith.constant 0 : index
    %c0_29 = arith.constant 0 : index
    %32 = vector.load %arg3[%c3_27, %c0_28, %c0_29] : memref<4x8x32xbf16, #tpu.memory_space<vmem>>, vector<1x8x32xbf16>
    %33 = vector.shape_cast %32 : vector<1x8x32xbf16> to vector<8x32xbf16>
    %cst_30 = arith.constant dense<0.000000e+00> : vector<16x32xf32>
    %34 = tpu.matmul %31, %33, %cst_30 {dimension_numbers = #tpu.dot_dimension_numbers<[1], [0], [0], [1], [0, 0, 1, 1], [], []>} : vector<16x8xbf16>, vector<8x32xbf16>, vector<16x32xf32> -> vector<16x32xf32>
    %35 = arith.addf %27, %34 : vector<16x32xf32>
    %c0_31 = arith.constant 0 : index
    %c0_32 = arith.constant 0 : index
    %36 = vector.load %arg5[%c0_31, %c0_32] : memref<16x32xf32, #tpu.memory_space<vmem>>, vector<16x32xf32>
    tpu.vector_store %arg5[%c0_31, %c0_32], %35 {strides = array<i32>} : memref<16x32xf32, #tpu.memory_space<vmem>>, vector<16x32xf32>,
    return
  }
  func.func @transform_0(%arg0: i32) -> (i32, i32, i32) {
    %c0_i32 = arith.constant 0 : i32
    %c0_i32_0 = arith.constant 0 : i32
    %c0_i32_1 = arith.constant 0 : i32
    return %c0_i32, %arg0, %c0_i32_0 : i32, i32, i32
  }
  func.func @transform_1(%arg0: i32) -> (i32, i32) {
    %c0_i32 = arith.constant 0 : i32
    %c0_i32_0 = arith.constant 0 : i32
    %c0_i32_1 = arith.constant 0 : i32
    return %c0_i32, %c0_i32_0 : i32, i32
  }
  func.func @transform_2(%arg0: i32) -> (i32, i32, i32) {
    %c0_i32 = arith.constant 0 : i32
    %c0_i32_0 = arith.constant 0 : i32
    %c0_i32_1 = arith.constant 0 : i32
    %c0_i32_2 = arith.constant 0 : i32
    return %c0_i32, %c0_i32_0, %c0_i32_1 : i32, i32, i32
  }
  func.func @transform_3(%arg0: i32) -> (i32, i32) {
    %c0_i32 = arith.constant 0 : i32
    %c0_i32_0 = arith.constant 0 : i32
    %c0_i32_1 = arith.constant 0 : i32
    return %c0_i32, %c0_i32_0 : i32, i32
  }
  func.func @transform_4(%arg0: i32) -> (i32, i32) {
    %c0_i32 = arith.constant 0 : i32
    %c0_i32_0 = arith.constant 0 : i32
    return %arg0, %c0_i32 : i32, i32
  }
}

</mosaic_0001>

<llo_original>
// kernel: gcl_forward.1
$region0: #{gcl_forward.1}
  #allocation0 [shape = 'u32[]', space=smem, size = 0x4, offset = 0x4, fixed_abs, tag = 'smem constant byte address 0x4 - core index']
  #allocation1 [shape = 'u32[72,128]{1,0:T(1,128)}', space=vmem, size = 0x9000, scoped, tag = 'internal scratch']
  %s0 = inlined_call_operand.vmem [shape: bf16[4,16,16], index: 0, kind: input, shape index: {}]
  %s1 = inlined_call_operand.vmem [shape: bf16[16,8], index: 1, kind: input, shape index: {}]
  %s2 = inlined_call_operand.vmem [shape: bf16[4,8,32], index: 2, kind: input, shape index: {}]
  %s3 = inlined_call_operand.vmem [shape: f32[1,32], index: 3, kind: input, shape index: {}]
  %s4 = inlined_call_operand.hbm [shape: f32[16,32], index: 4, kind: output, shape index: {}]
  %s5 = sld [smem:[#allocation0]]
  $region26: #{gcl_forward.1} parent=0
    _
  %s7 = ssub.s32 1, %s5
  %s8 = scalar_select 0, %s7, %s5
  $region1: #{gcl_forward.1} parent=0
    #allocation2 [shape = 'u8[8192]{0}', space=vmem, size = 0x2000, scoped, tag = 'output window, operand 0, single buffered']
    #allocation3 [shape = 's32[1]{0}', space=sflag, size = 0x4, scoped, tag = 'scoped memory for gcl_forward.1']
    %9 = vsyncpa [#allocation3], 0
    // Predicated region
    $region2: #{gcl_forward.1} parent=1 // pred_check
      _
    $region3: #{gcl_forward.1} parent=1 // pred_check_branch
      %11 = sbr.rel (0) target = $region5
    $region4: #{gcl_forward.1} parent=1 // pred_region
      _
    $region5: #{gcl_forward.1} parent=1 // pred_fallthru
      _
    // Predicated region
    $region6: #{gcl_forward.1} parent=1 // pred_check
      _
    $region7: #{gcl_forward.1} parent=1 // pred_check_branch
      %13 = sbr.rel (0) target = $region9
    $region8: #{gcl_forward.1} parent=1 // pred_region
      _
    $region9: #{gcl_forward.1} parent=1 // pred_fallthru
      _
    // Predicated region
    $region10: #{gcl_forward.1} parent=1 // pred_check
      _
    $region11: #{gcl_forward.1} parent=1 // pred_check_branch
      %15 = sbr.rel (0) target = $region13
    $region12: #{gcl_forward.1} parent=1 // pred_region
      _
    $region13: #{gcl_forward.1} parent=1 // pred_fallthru
      _
    // Predicated region
    $region14: #{gcl_forward.1} parent=1 // pred_check
      _
    $region15: #{gcl_forward.1} parent=1 // pred_check_branch
      %17 = sbr.rel (0) target = $region17
    $region16: #{gcl_forward.1} parent=1 // pred_region
      _
    $region17: #{gcl_forward.1} parent=1 // pred_fallthru
      _
    %v19 = vld [vmem:[%s1] sm:$0xf]
    %v20 = vld [vmem:[%s1 + $0x4] sm:$0xf]
    %v21 = vld [vmem:[%s3] sm:$0x1]
    %v23 = vperm.slane %v21, 0
    %v25 = vld [vmem:[%s0] sm:$0xf]
    %v26 = vld [vmem:[%s0 + $0x4] sm:$0xf]
    %v29 = vunpack.c.l.b16 %v25
    %v30 = vunpack.c.l.b16 %v26
    %v31 = vpack.c.b16 %v30, %v29
    %v34 = vunpack.c.l.b16 %v19
    %v35 = vunpack.c.l.b16 %v20
    %v36 = vpack.c.b16 %v35, %v34
    %vm38 = vcmask 130048
    %v40 = vsel %vm38, %v31, 0
    %42 = vmatpush.bf16.msra.mxu0 0
    %43 = vmatpush.bf16.msra.mxu0 0
    %44 = vmatpush.bf16.msra.mxu0 0
    %45 = vmatpush.bf16.msra.mxu0 0
    %46 = vmatpush.bf16.msra.mxu0 0
    %47 = vmatpush.bf16.msra.mxu0 0
    %48 = vmatpush.bf16.msra.mxu0 0
    %49 = vmatpush.bf16.msra.mxu0 %v36
    %50 = vmatmul.bf16.gmra.mxu0 %v40
    %v51 = vpop.f32.mrf.mxu0
    %v52 = vadd.f32 0.0, %v51
    %v53 = vpop.f32.mrf.mxu0
    %v54 = vadd.f32 0.0, %v53
    %55 = vdwg.mxu0
    %v56 = vpack.c.bf16 %v54, %v52
    %v57 = vld [vmem:[%s2] sm:$0xf]
    %vm58 = vcmask 64512
    %v60 = vsel %vm58, %v56, 0
    %vm62 = vcmask 1043456
    %v64 = vsel %vm62, %v57, 0
    %66 = vmatpush.bf16.msra.mxu0 0
    %67 = vmatpush.bf16.msra.mxu0 0
    %68 = vmatpush.bf16.msra.mxu0 0
    %69 = vmatpush.bf16.msra.mxu0 0
    %70 = vmatpush.bf16.msra.mxu0 0
    %71 = vmatpush.bf16.msra.mxu0 0
    %72 = vmatpush.bf16.msra.mxu0 0
    %73 = vmatpush.bf16.msra.mxu0 %v64
    %74 = vmatmul.bf16.gmra.mxu0 %v60
    %v75 = vpop.f32.mrf.mxu0
    %v76 = vadd.f32 0.0, %v75
    %v77 = vpop.f32.mrf.mxu0
    %v78 = vadd.f32 0.0, %v77
    %79 = vdwg.mxu0
    %v80 = vadd.f32 %v23, %v76
    %v81 = vadd.f32 %v23, %v78
    %s82 = scalar_lea.vmem %s0, 8
    %v83 = vld [vmem:[%s82] sm:$0xf]
    %v84 = vld [vmem:[%s82 + $0x4] sm:$0xf]
    %v87 = vunpack.c.l.b16 %v83
    %v88 = vunpack.c.l.b16 %v84
    %v89 = vpack.c.b16 %v88, %v87
    %v91 = vsel %vm38, %v89, 0
    %93 = vmatpush.bf16.msra.mxu0 0
    %94 = vmatpush.bf16.msra.mxu0 0
    %95 = vmatpush.bf16.msra.mxu0 0
    %96 = vmatpush.bf16.msra.mxu0 0
    %97 = vmatpush.bf16.msra.mxu0 0
    %98 = vmatpush.bf16.msra.mxu0 0
    %99 = vmatpush.bf16.msra.mxu0 0
    %100 = vmatpush.bf16.msra.mxu0 %v36
    %101 = vmatmul.bf16.gmra.mxu0 %v91
    %v102 = vpop.f32.mrf.mxu0
    %v103 = vadd.f32 0.0, %v102
    %v104 = vpop.f32.mrf.mxu0
    %v105 = vadd.f32 0.0, %v104
    %106 = vdwg.mxu0
    %v107 = vpack.c.bf16 %v105, %v103
    %s108 = scalar_lea.vmem %s2, 4
    %v109 = vld [vmem:[%s108] sm:$0xf]
    %v111 = vsel %vm58, %v107, 0
    %v114 = vsel %vm62, %v109, 0
    %116 = vmatpush.bf16.msra.mxu0 0
    %117 = vmatpush.bf16.msra.mxu0 0
    %118 = vmatpush.bf16.msra.mxu0 0
    %119 = vmatpush.bf16.msra.mxu0 0
    %120 = vmatpush.bf16.msra.mxu0 0
    %121 = vmatpush.bf16.msra.mxu0 0
    %122 = vmatpush.bf16.msra.mxu0 0
    %123 = vmatpush.bf16.msra.mxu0 %v114
    %124 = vmatmul.bf16.gmra.mxu0 %v111
    %v125 = vpop.f32.mrf.mxu0
    %v126 = vadd.f32 0.0, %v125
    %v127 = vpop.f32.mrf.mxu0
    %v128 = vadd.f32 0.0, %v127
    %129 = vdwg.mxu0
    %v130 = vadd.f32 %v80, %v126
    %v131 = vadd.f32 %v81, %v128
    %s132 = scalar_lea.vmem %s0, 16
    %v133 = vld [vmem:[%s132] sm:$0xf]
    %v134 = vld [vmem:[%s132 + $0x4] sm:$0xf]
    %v137 = vunpack.c.l.b16 %v133
    %v138 = vunpack.c.l.b16 %v134
    %v139 = vpack.c.b16 %v138, %v137
    %v141 = vsel %vm38, %v139, 0
    %143 = vmatpush.bf16.msra.mxu0 0
    %144 = vmatpush.bf16.msra.mxu0 0
    %145 = vmatpush.bf16.msra.mxu0 0
    %146 = vmatpush.bf16.msra.mxu0 0
    %147 = vmatpush.bf16.msra.mxu0 0
    %148 = vmatpush.bf16.msra.mxu0 0
    %149 = vmatpush.bf16.msra.mxu0 0
    %150 = vmatpush.bf16.msra.mxu0 %v36
    %151 = vmatmul.bf16.gmra.mxu0 %v141
    %v152 = vpop.f32.mrf.mxu0
    %v153 = vadd.f32 0.0, %v152
    %v154 = vpop.f32.mrf.mxu0
    %v155 = vadd.f32 0.0, %v154
    %156 = vdwg.mxu0
    %v157 = vpack.c.bf16 %v155, %v153
    %s158 = scalar_lea.vmem %s2, 8
    %v159 = vld [vmem:[%s158] sm:$0xf]
    %v161 = vsel %vm58, %v157, 0
    %v164 = vsel %vm62, %v159, 0
    %166 = vmatpush.bf16.msra.mxu0 0
    %167 = vmatpush.bf16.msra.mxu0 0
    %168 = vmatpush.bf16.msra.mxu0 0
    %169 = vmatpush.bf16.msra.mxu0 0
    %170 = vmatpush.bf16.msra.mxu0 0
    %171 = vmatpush.bf16.msra.mxu0 0
    %172 = vmatpush.bf16.msra.mxu0 0
    %173 = vmatpush.bf16.msra.mxu0 %v164
    %174 = vmatmul.bf16.gmra.mxu0 %v161
    %v175 = vpop.f32.mrf.mxu0
    %v176 = vadd.f32 0.0, %v175
    %v177 = vpop.f32.mrf.mxu0
    %v178 = vadd.f32 0.0, %v177
    %179 = vdwg.mxu0
    %v180 = vadd.f32 %v130, %v176
    %v181 = vadd.f32 %v131, %v178
    %s182 = scalar_lea.vmem %s0, 24
    %v183 = vld [vmem:[%s182] sm:$0xf]
    %v184 = vld [vmem:[%s182 + $0x4] sm:$0xf]
    %v187 = vunpack.c.l.b16 %v183
    %v188 = vunpack.c.l.b16 %v184
    %v189 = vpack.c.b16 %v188, %v187
    %v191 = vsel %vm38, %v189, 0
    %193 = vmatpush.bf16.msra.mxu0 0
    %194 = vmatpush.bf16.msra.mxu0 0
    %195 = vmatpush.bf16.msra.mxu0 0
    %196 = vmatpush.bf16.msra.mxu0 0
    %197 = vmatpush.bf16.msra.mxu0 0
    %198 = vmatpush.bf16.msra.mxu0 0
    %199 = vmatpush.bf16.msra.mxu0 0
    %200 = vmatpush.bf16.msra.mxu0 %v36
    %201 = vmatmul.bf16.gmra.mxu0 %v191
    %v202 = vpop.f32.mrf.mxu0
    %v203 = vadd.f32 0.0, %v202
    %v204 = vpop.f32.mrf.mxu0
    %v205 = vadd.f32 0.0, %v204
    %206 = vdwg.mxu0
    %v207 = vpack.c.bf16 %v205, %v203
    %s208 = scalar_lea.vmem %s2, 12
    %v209 = vld [vmem:[%s208] sm:$0xf]
    %v211 = vsel %vm58, %v207, 0
    %v214 = vsel %vm62, %v209, 0
    %216 = vmatpush.bf16.msra.mxu0 0
    %217 = vmatpush.bf16.msra.mxu0 0
    %218 = vmatpush.bf16.msra.mxu0 0
    %219 = vmatpush.bf16.msra.mxu0 0
    %220 = vmatpush.bf16.msra.mxu0 0
    %221 = vmatpush.bf16.msra.mxu0 0
    %222 = vmatpush.bf16.msra.mxu0 0
    %223 = vmatpush.bf16.msra.mxu0 %v214
    %224 = vmatmul.bf16.gmra.mxu0 %v211
    %v225 = vpop.f32.mrf.mxu0
    %v226 = vadd.f32 0.0, %v225
    %v227 = vpop.f32.mrf.mxu0
    %v228 = vadd.f32 0.0, %v227
    %229 = vdwg.mxu0
    %v230 = vadd.f32 %v180, %v226
    %v231 = vadd.f32 %v181, %v228
    %vm232 = vcmask 261120
    %233 = vst.msk [vmem:[#allocation2] sm:$0xff] %vm232, %v230
    %234 = vst.msk [vmem:[#allocation2 + $0x8] sm:$0xff] %vm232, %v231
    // Predicated region
    $region18: #{gcl_forward.1} parent=1 // pred_check
      _
    $region19: #{gcl_forward.1} parent=1 // pred_check_branch
      %236 = sbr.rel (0) target = $region21
    $region20: #{gcl_forward.1} parent=1 // pred_region
      %238 = vsyncadd [#allocation3], 0
      %s239 = sshll.u32 [#allocation2], 4
      %s240 = int_to_ptr.vmem [resolvable:$true] %s239
      %s241 = sshll.u32 %s4, 4
      %s242 = int_to_ptr.hbm [resolvable:$true] %s241
      %247 = dma.vmem_to_hbm [thread:$0]  %s240, 256, %s242, [#allocation3], 128, 128, 8
    $region21: #{gcl_forward.1} parent=1 // pred_fallthru
      _
    // Predicated region
    $region22: #{gcl_forward.1} parent=1 // pred_check
      _
    $region23: #{gcl_forward.1} parent=1 // pred_check_branch
      %249 = sbr.rel (0) target = $region25
    $region24: #{gcl_forward.1} parent=1 // pred_region
      %251 = dma.done [#allocation3], 256
    $region25: #{gcl_forward.1} parent=1 // pred_fallthru
      _
    %252 = vsyncpa [#allocation3], 1

</llo_original>
